<compile_context>
chip_gen: v7x
topology: tpu7x:2x2x1
jax: 0.10.0
libtpu: 0.0.40
codegen_flags: <defaults>
</compile_context>

<pallas_src>
import functools

import jax
import jax.numpy as jnp
import numpy as np
from jax.experimental import pallas as pl
from jax.experimental.pallas import tpu as pltpu

_LANES = 128


def _ce_kernel(logits_ref, labels_ref, sums_ref, counts_ref, *,
               valid_rows, needs_row_mask):
    """One (C, TR, 128) pixel tile: per-class CE-loss partial sums and counts."""
    t = pl.program_id(2)

    # Per-(batch, pixel-chunk) accumulator init on the first row tile.
    @pl.when(t == 0)
    def _():
        sums_ref[...] = jnp.zeros_like(sums_ref)
        counts_ref[...] = jnp.zeros_like(counts_ref)

    logits = logits_ref[...].astype(jnp.float32)      # (C, TR, 128)
    labels = labels_ref[...].astype(jnp.int32)        # (1, TR, 128)
    c, tr, _ = logits.shape

    if needs_row_mask:
        # Ragged last row tile: rows past the true row count hold garbage
        # (possibly NaN logits / valid-looking labels). Force their labels to
        # -1 so they match no class; the select below then ignores any NaN.
        row = jax.lax.broadcasted_iota(jnp.int32, (1, tr, _LANES), 1) + t * tr
        labels = jnp.where(row < valid_rows, labels, -1)

    # Numerically-stable log-sum-exp over the class axis (leading dim ->
    # elementwise VPU ops across C vregs, no cross-lane work).
    mx = jnp.max(logits, axis=0, keepdims=True)                               # (1, TR, 128)
    lse = jnp.log(jnp.sum(jnp.exp(logits - mx), axis=0, keepdims=True)) + mx  # (1, TR, 128)

    # One-hot compare against a tiny (C, 1, 128) class iota (broadcast, never
    # materialized at (C, TR, 128)). Labels outside [0, C) (ignore_index,
    # padding, masked rows) match no class and contribute nothing.
    class_ids = jax.lax.broadcasted_iota(jnp.int32, (c, 1, _LANES), 0)
    hit = class_ids == labels                                                 # (C, TR, 128) bool

    # Fused per-pixel CE: -log_softmax(x)[y] = lse - x[y]. Select (not mul) so
    # NaN in never-selected pixels cannot poison the accumulators.
    contrib = jnp.where(hit, lse - logits, 0.0)                               # (C, TR, 128)

    # Lane-resident (C, 128) partial accumulators; final lane reduce in glue.
    sums_ref[...] += jnp.sum(contrib, axis=1)
    counts_ref[...] += jnp.sum(hit.astype(jnp.float32), axis=1)


def ce_loss(output, labels, ignore_index=-100, *, pixel_chunks=2,
            vmem_budget_bytes=32 * 1024 * 1024):
    """CELoss.forward: output (B, C, *spatial) float, labels (B, 1, *spatial) int."""
    # TODO(synk): the per-class `weight` arg of nn.CrossEntropyLoss (None in
    # this module's default construction) is not implemented.
    B, C = output.shape[0], output.shape[1]
    S = int(np.prod(output.shape[2:]))

    logits = output.reshape(B, C, S)                  # free (contiguous) reshape
    if jnp.issubdtype(labels.dtype, jnp.signedinteger):
        lab = labels.reshape(B, 1, S)                 # keep narrow label dtypes
    else:
        lab = labels.reshape(B, 1, S).astype(jnp.int32)

    nc = max(1, int(pixel_chunks))
    # Pad the pixel axis to a multiple of 128*nc so it reshapes (for free) into
    # (nc, R, 128). Padded logits are 0 and padded labels -1 (match no class).
    s_pad = -(-S // (_LANES * nc)) * (_LANES * nc)
    if s_pad != S:
        # TODO(synk): one extra HBM copy when S % (128*pixel_chunks) != 0.
        logits = jnp.pad(logits, ((0, 0), (0, 0), (0, s_pad - S)))
        lab = jnp.pad(lab, ((0, 0), (0, 0), (0, s_pad - S)), constant_values=-1)
    R = s_pad // (_LANES * nc)
    logits = logits.reshape(B, C, nc, R, _LANES)
    lab = lab.reshape(B, 1, nc, R, _LANES)

    itemsize = jnp.dtype(logits.dtype).itemsize
    lab_itemsize = jnp.dtype(lab.dtype).itemsize
    # Sublane alignment of the row tile (packed dtypes need 16/32 rows).
    align = max(8, 32 // min(itemsize, 4), 32 // min(lab_itemsize, 4))

    # Rows per tile from an explicit VMEM budget: 2x logits window + 2x labels
    # window + ~3 full-tile f32 temporaries (upcast / exp / contrib chain).
    per_row = (2 * C * _LANES * itemsize
               + 2 * _LANES * lab_itemsize
               + 3 * C * _LANES * 4)
    tr = vmem_budget_bytes // per_row
    if tr >= R:
        tr = R                                        # full-extent block, always legal
    else:
        tr = max(align, (tr // align) * align)
    n_t = pl.cdiv(R, tr)
    needs_row_mask = (R % tr) != 0

    vmem_limit = int(min(max(int(per_row * tr * 1.5) + (2 << 20), 32 << 20), 56 << 20))

    kernel = functools.partial(_ce_kernel, valid_rows=R,
                               needs_row_mask=needs_row_mask)

    cost = pl.CostEstimate(
        flops=8 * B * C * s_pad,
        transcendentals=B * s_pad * (C + 1),
        bytes_accessed=(B * C * s_pad * itemsize + B * s_pad * lab_itemsize
                        + 2 * B * nc * C * _LANES * 4))

    sums_b, counts_b = pl.pallas_call(
        kernel,
        out_shape=(jax.ShapeDtypeStruct((B, nc, C, _LANES), jnp.float32),
                   jax.ShapeDtypeStruct((B, nc, C, _LANES), jnp.float32)),
        grid_spec=pltpu.PrefetchScalarGridSpec(
            num_scalar_prefetch=0,
            grid=(B, nc, n_t),
            in_specs=[
                pl.BlockSpec((None, C, None, tr, _LANES),
                             lambda b, cc, t: (b, 0, cc, t, 0)),
                pl.BlockSpec((None, 1, None, tr, _LANES),
                             lambda b, cc, t: (b, 0, cc, t, 0)),
            ],
            out_specs=(
                pl.BlockSpec((None, None, C, _LANES),
                             lambda b, cc, t: (b, cc, 0, 0)),
                pl.BlockSpec((None, None, C, _LANES),
                             lambda b, cc, t: (b, cc, 0, 0)),
            )),
        compiler_params=pltpu.CompilerParams(
            dimension_semantics=("parallel", "parallel", "arbitrary"),
            vmem_limit_bytes=vmem_limit),
        cost_estimate=cost,
    )(logits, lab)

    sums = jnp.sum(sums_b, axis=(0, 1, 3))            # (C,)
    counts = jnp.sum(counts_b, axis=(0, 1, 3))        # (C,)

    # Class-balanced mean (tiny length-C glue): mean loss per present class,
    # averaged over present classes (excluding ignore_index if it's a class id).
    class_ids = jnp.arange(C)
    valid = (counts > 0) & (class_ids != ignore_index)
    class_mean = jnp.where(valid, sums / jnp.maximum(counts, 1.0), 0.0)
    n_valid = jnp.sum(valid.astype(jnp.float32))
    # NOTE: n_valid == 0 (everything ignored) yields NaN, same as the reference.
    return jnp.sum(class_mean) / n_valid


def _ce_loss_ref(output, labels, ignore_index=-100):
    """Pure-JAX reference matching the PyTorch forward semantics (4-D case)."""
    B, C, H, W = output.shape
    logits = jnp.transpose(output, (0, 2, 3, 1)).reshape(-1, C).astype(jnp.float32)
    lab = jnp.transpose(labels, (0, 2, 3, 1)).reshape(-1).astype(jnp.int32)
    logp = jax.nn.log_softmax(logits, axis=-1)
    safe = jnp.clip(lab, 0, C - 1)
    per_px = -jnp.take_along_axis(logp, safe[:, None], axis=-1)[:, 0]
    per_px = jnp.where(lab == ignore_index, 0.0, per_px)
    loss_sum, n_valid = 0.0, 0.0
    for i in range(C):
        if i == ignore_index:
            continue
        mask = (lab == i).astype(jnp.float32)
        cnt = jnp.sum(mask)
        mean_i = jnp.sum(per_px * mask) / jnp.maximum(cnt, 1.0)
        present = (cnt > 0).astype(jnp.float32)
        loss_sum = loss_sum + present * mean_i
        n_valid = n_valid + present
    return loss_sum / n_valid


if __name__ == "__main__":
    key = jax.random.PRNGKey(0)
    k1, k2, k3, k4 = jax.random.split(key, 4)

    # Case 1: canonical small NCHW case (no padding, one row tile per chunk).
    B, C, H, W = 2, 4, 16, 16
    output = jax.random.normal(k1, (B, C, H, W), dtype=jnp.float32)
    labels = jax.random.randint(k2, (B, 1, H, W), 0, C).astype(jnp.int32)
    loss = ce_loss(output, labels)
    jax.block_until_ready(loss)
    ref = _ce_loss_ref(output, labels)
    assert np.isclose(np.asarray(loss), np.asarray(ref), rtol=1e-4, atol=1e-5), (loss, ref)

    # Case 2: odd spatial size (wrapper pad path), B=1 (pixel-chunk split keeps
    # both v7x cores busy), tiny VMEM budget to force the ragged row-tile mask.
    B2, C2, H2, W2 = 1, 5, 60, 60
    out2 = jax.random.normal(k3, (B2, C2, H2, W2), dtype=jnp.float32)
    lab2 = jax.random.randint(k4, (B2, 1, H2, W2), 0, C2).astype(jnp.int32)
    loss2 = ce_loss(out2, lab2, vmem_budget_bytes=64 * 1024)
    jax.block_until_ready(loss2)
    ref2 = _ce_loss_ref(out2, lab2)
    assert np.isclose(np.asarray(loss2), np.asarray(ref2), rtol=1e-4, atol=1e-5), (loss2, ref2)

    print("KERNEL_OK")
</pallas_src>

<mosaic_0001>
module attributes {stable_mosaic.version = 11 : i64} {
  func.func @_ce_kernel(%arg0: i32, %arg1: i32, %arg2: i32, %arg3: memref<1x4x1x1x128xf32, #tpu.memory_space<vmem>>, %arg4: memref<1x1x1x1x128xi32, #tpu.memory_space<vmem>>, %arg5: memref<1x1x4x128xf32, #tpu.memory_space<vmem>>, %arg6: memref<1x1x4x128xf32, #tpu.memory_space<vmem>>) attributes {dimension_semantics = [#tpu.dimension_semantics<parallel>, #tpu.dimension_semantics<parallel>, #tpu.dimension_semantics<arbitrary>], iteration_bounds = array<i64: 2, 2, 1>, scalar_prefetch = 0 : i64, scratch_operands = 0 : i64, tpu.core_type = #tpu.core_type<tc>, window_params = [{transform_indices = @transform_0, window_bounds = array<i64: 1, 4, 1, 1, 128>}, {transform_indices = @transform_1, window_bounds = array<i64: 1, 1, 1, 1, 128>}, {transform_indices = @transform_2, window_bounds = array<i64: 1, 1, 4, 128>}, {transform_indices = @transform_3, window_bounds = array<i64: 1, 1, 4, 128>}]} {
    %c0_i32 = arith.constant 0 : i32
    %0 = arith.cmpi eq, %arg2, %c0_i32 : i32
    %1 = arith.extui %0 : i1 to i32
    %c0_i32_0 = arith.constant 0 : i32
    %2 = arith.cmpi ne, %1, %c0_i32_0 : i32
    scf.if %2 {
      %cst_30 = arith.constant 0.000000e+00 : f32
      %39 = vector.broadcast %cst_30 : f32 to vector<4x128xf32>
      %c0_31 = arith.constant 0 : index
      %c0_32 = arith.constant 0 : index
      %c0_33 = arith.constant 0 : index
      %c0_34 = arith.constant 0 : index
      %40 = vector.load %arg5[%c0_31, %c0_32, %c0_33, %c0_34] : memref<1x1x4x128xf32, #tpu.memory_space<vmem>>, vector<1x1x4x128xf32>
      %41 = vector.shape_cast %40 : vector<1x1x4x128xf32> to vector<4x128xf32>
      %42 = vector.shape_cast %39 : vector<4x128xf32> to vector<1x1x4x128xf32>
      tpu.vector_store %arg5[%c0_31, %c0_32, %c0_33, %c0_34], %42 {strides = array<i32>} : memref<1x1x4x128xf32, #tpu.memory_space<vmem>>, vector<1x1x4x128xf32>,
      %cst_35 = arith.constant 0.000000e+00 : f32
      %43 = vector.broadcast %cst_35 : f32 to vector<4x128xf32>
      %c0_36 = arith.constant 0 : index
      %c0_37 = arith.constant 0 : index
      %c0_38 = arith.constant 0 : index
      %c0_39 = arith.constant 0 : index
      %44 = vector.load %arg6[%c0_36, %c0_37, %c0_38, %c0_39] : memref<1x1x4x128xf32, #tpu.memory_space<vmem>>, vector<1x1x4x128xf32>
      %45 = vector.shape_cast %44 : vector<1x1x4x128xf32> to vector<4x128xf32>
      %46 = vector.shape_cast %43 : vector<4x128xf32> to vector<1x1x4x128xf32>
      tpu.vector_store %arg6[%c0_36, %c0_37, %c0_38, %c0_39], %46 {strides = array<i32>} : memref<1x1x4x128xf32, #tpu.memory_space<vmem>>, vector<1x1x4x128xf32>,
    } else {
    }
    %c0 = arith.constant 0 : index
    %c0_1 = arith.constant 0 : index
    %c0_2 = arith.constant 0 : index
    %c0_3 = arith.constant 0 : index
    %c0_4 = arith.constant 0 : index
    %3 = vector.load %arg3[%c0, %c0_1, %c0_2, %c0_3, %c0_4] : memref<1x4x1x1x128xf32, #tpu.memory_space<vmem>>, vector<1x4x1x1x128xf32>
    %4 = vector.shape_cast %3 : vector<1x4x1x1x128xf32> to vector<4x1x128xf32>
    %c0_5 = arith.constant 0 : index
    %c0_6 = arith.constant 0 : index
    %c0_7 = arith.constant 0 : index
    %c0_8 = arith.constant 0 : index
    %c0_9 = arith.constant 0 : index
    %5 = vector.load %arg4[%c0_5, %c0_6, %c0_7, %c0_8, %c0_9] : memref<1x1x1x1x128xi32, #tpu.memory_space<vmem>>, vector<1x1x1x1x128xi32>
    %6 = vector.shape_cast %5 : vector<1x1x1x1x128xi32> to vector<1x1x128xi32>
    %cst = arith.constant dense<0xFF800000> : vector<1x128xf32>
    %7 = vector.multi_reduction <maximumf>, %4, %cst [0] : vector<4x1x128xf32> to vector<1x128xf32>
    %8 = vector.shape_cast %7 : vector<1x128xf32> to vector<1x1x128xf32>
    %9 = vector.broadcast %8 : vector<1x1x128xf32> to vector<4x1x128xf32>
    %10 = arith.subf %4, %9 : vector<4x1x128xf32>
    %11 = math.exp %10 : vector<4x1x128xf32>
    %cst_10 = arith.constant dense<0.000000e+00> : vector<1x128xf32>
    %12 = vector.multi_reduction <add>, %11, %cst_10 [0] : vector<4x1x128xf32> to vector<1x128xf32>
    %13 = vector.shape_cast %12 : vector<1x128xf32> to vector<1x1x128xf32>
    %14 = math.log %13 : vector<1x1x128xf32>
    %15 = arith.addf %14, %8 : vector<1x1x128xf32>
    %16 = tpu.iota {dimensions = array<i32: 0>} : vector<4x1x128xi32>
    %17 = vector.broadcast %6 : vector<1x1x128xi32> to vector<4x1x128xi32>
    %18 = arith.cmpi eq, %16, %17 : vector<4x1x128xi32>
    %19 = vector.broadcast %15 : vector<1x1x128xf32> to vector<4x1x128xf32>
    %20 = arith.subf %19, %4 : vector<4x1x128xf32>
    %cst_11 = arith.constant 0.000000e+00 : f32
    %21 = vector.broadcast %cst_11 : f32 to vector<4x1x128xf32>
    %22 = arith.select %18, %20, %21 : vector<4x1x128xi1>, vector<4x1x128xf32>
    %c0_12 = arith.constant 0 : index
    %c0_13 = arith.constant 0 : index
    %c0_14 = arith.constant 0 : index
    %c0_15 = arith.constant 0 : index
    %23 = vector.load %arg5[%c0_12, %c0_13, %c0_14, %c0_15] : memref<1x1x4x128xf32, #tpu.memory_space<vmem>>, vector<1x1x4x128xf32>
    %24 = vector.shape_cast %23 : vector<1x1x4x128xf32> to vector<4x128xf32>
    %cst_16 = arith.constant dense<0.000000e+00> : vector<4x128xf32>
    %25 = vector.multi_reduction <add>, %22, %cst_16 [1] : vector<4x1x128xf32> to vector<4x128xf32>
    %26 = arith.addf %24, %25 : vector<4x128xf32>
    %c0_17 = arith.constant 0 : index
    %c0_18 = arith.constant 0 : index
    %c0_19 = arith.constant 0 : index
    %c0_20 = arith.constant 0 : index
    %27 = vector.load %arg5[%c0_17, %c0_18, %c0_19, %c0_20] : memref<1x1x4x128xf32, #tpu.memory_space<vmem>>, vector<1x1x4x128xf32>
    %28 = vector.shape_cast %27 : vector<1x1x4x128xf32> to vector<4x128xf32>
    %29 = vector.shape_cast %26 : vector<4x128xf32> to vector<1x1x4x128xf32>
    tpu.vector_store %arg5[%c0_17, %c0_18, %c0_19, %c0_20], %29 {strides = array<i32>} : memref<1x1x4x128xf32, #tpu.memory_space<vmem>>, vector<1x1x4x128xf32>,
    %c0_21 = arith.constant 0 : index
    %c0_22 = arith.constant 0 : index
    %c0_23 = arith.constant 0 : index
    %c0_24 = arith.constant 0 : index
    %30 = vector.load %arg6[%c0_21, %c0_22, %c0_23, %c0_24] : memref<1x1x4x128xf32, #tpu.memory_space<vmem>>, vector<1x1x4x128xf32>
    %31 = vector.shape_cast %30 : vector<1x1x4x128xf32> to vector<4x128xf32>
    %32 = arith.extui %18 : vector<4x1x128xi1> to vector<4x1x128xi32>
    %33 = arith.sitofp %32 : vector<4x1x128xi32> to vector<4x1x128xf32>
    %cst_25 = arith.constant dense<0.000000e+00> : vector<4x128xf32>
    %34 = vector.multi_reduction <add>, %33, %cst_25 [1] : vector<4x1x128xf32> to vector<4x128xf32>
    %35 = arith.addf %31, %34 : vector<4x128xf32>
    %c0_26 = arith.constant 0 : index
    %c0_27 = arith.constant 0 : index
    %c0_28 = arith.constant 0 : index
    %c0_29 = arith.constant 0 : index
    %36 = vector.load %arg6[%c0_26, %c0_27, %c0_28, %c0_29] : memref<1x1x4x128xf32, #tpu.memory_space<vmem>>, vector<1x1x4x128xf32>
    %37 = vector.shape_cast %36 : vector<1x1x4x128xf32> to vector<4x128xf32>
    %38 = vector.shape_cast %35 : vector<4x128xf32> to vector<1x1x4x128xf32>
    tpu.vector_store %arg6[%c0_26, %c0_27, %c0_28, %c0_29], %38 {strides = array<i32>} : memref<1x1x4x128xf32, #tpu.memory_space<vmem>>, vector<1x1x4x128xf32>,
    return
  }
  func.func @transform_0(%arg0: i32, %arg1: i32, %arg2: i32) -> (i32, i32, i32, i32, i32) {
    %c0_i32 = arith.constant 0 : i32
    %c0_i32_0 = arith.constant 0 : i32
    %c0_i32_1 = arith.constant 0 : i32
    return %arg0, %c0_i32, %arg1, %arg2, %c0_i32_0 : i32, i32, i32, i32, i32
  }
  func.func @transform_1(%arg0: i32, %arg1: i32, %arg2: i32) -> (i32, i32, i32, i32, i32) {
    %c0_i32 = arith.constant 0 : i32
    %c0_i32_0 = arith.constant 0 : i32
    %c0_i32_1 = arith.constant 0 : i32
    return %arg0, %c0_i32, %arg1, %arg2, %c0_i32_0 : i32, i32, i32, i32, i32
  }
  func.func @transform_2(%arg0: i32, %arg1: i32, %arg2: i32) -> (i32, i32, i32, i32) {
    %c0_i32 = arith.constant 0 : i32
    %c0_i32_0 = arith.constant 0 : i32
    %c0_i32_1 = arith.constant 0 : i32
    return %arg0, %arg1, %c0_i32, %c0_i32_0 : i32, i32, i32, i32
  }
  func.func @transform_3(%arg0: i32, %arg1: i32, %arg2: i32) -> (i32, i32, i32, i32) {
    %c0_i32 = arith.constant 0 : i32
    %c0_i32_0 = arith.constant 0 : i32
    %c0_i32_1 = arith.constant 0 : i32
    return %arg0, %arg1, %c0_i32, %c0_i32_0 : i32, i32, i32, i32
  }
}

</mosaic_0001>

<llo_original>
// kernel: tpu_custom_call.1
$region0: #{tpu_custom_call.1}
  #allocation0 [shape = 'u32[]', space=smem, size = 0x4, offset = 0x4, fixed_abs, tag = 'smem constant byte address 0x4 - core index']
  #allocation1 [shape = 'u32[144,128]{1,0:T(1,128)}', space=vmem, size = 0x12000, scoped, tag = 'internal scratch']
  %s0 = inlined_call_operand.hbm [shape: f32[2,4,2,1,128], index: 0, kind: input, shape index: {}]
  %s1 = inlined_call_operand.hbm [shape: s32[2,1,2,1,128], index: 1, kind: input, shape index: {}]
  %s2 = inlined_call_operand.hbm [shape: f32[2,2,4,128], index: 2, kind: output, shape index: {0}]
  %s3 = inlined_call_operand.hbm [shape: f32[2,2,4,128], index: 3, kind: output, shape index: {1}]
  %4 = xla_tuple %s2, %s3
  %s5 = sld [smem:[#allocation0]]
  $region61: #{tpu_custom_call.1} parent=0
    _
  %s7 = ssub.s32 1, %s5
  %s8 = scalar_select 0, %s7, %s5
  $region1: #{tpu_custom_call.1} parent=0
    #allocation2 [shape = 'u8[4096]{0}', space=vmem, size = 0x1000, scoped, tag = 'input window, operand 0']
    #allocation3 [shape = 's32[2]{0}', space=sflag, size = 0x8, scoped, tag = 'scoped memory for tpu_custom_call.1']
    #allocation4 [shape = 's32[2]{0}', space=sflag, size = 0x8, scoped, tag = 'scoped memory for tpu_custom_call.1']
    #allocation5 [shape = 'u8[1024]{0}', space=vmem, size = 0x400, scoped, tag = 'input window, operand 1']
    #allocation6 [shape = 's32[2]{0}', space=sflag, size = 0x8, scoped, tag = 'scoped memory for tpu_custom_call.1']
    #allocation7 [shape = 'u8[4096]{0}', space=vmem, size = 0x1000, scoped, tag = 'output window, operand 0']
    #allocation8 [shape = 'u8[4096]{0}', space=vmem, size = 0x1000, scoped, tag = 'output window, operand 1']
    #allocation9 [shape = 's32[2]{0}', space=sflag, size = 0x8, scoped, tag = 'scoped memory for tpu_custom_call.1']
    %9 = vsyncpa [#allocation3], 0
    %s10 = scalar_lea.sflag [#allocation3], 1
    %11 = vsyncpa %s10, 0
    %12 = vsyncpa [#allocation6], 0
    %s13 = scalar_lea.sflag [#allocation6], 1
    %14 = vsyncpa %s13, 0
    %15 = vsyncpa [#allocation4], 0
    %s16 = scalar_lea.sflag [#allocation4], 1
    %17 = vsyncpa %s16, 0
    %18 = vsyncpa [#allocation9], 0
    %s19 = scalar_lea.sflag [#allocation9], 1
    %20 = vsyncpa %s19, 0
    loop: start=0, step=1, limit=6
    $region2: #{tpu_custom_call.1} parent=1 // loop_pre_header
      _
    $region3: #{tpu_custom_call.1} parent=1 // loop_header
      %s22 = sphi 0, %s26
      %p23 = scmp.ge.s32.totalorder %s22, 6
      %s29 = sphi 0, %s48
      %s30 = sphi 0, %s44
      %s31 = sphi 0, %s40
      %s32 = sphi 0, %s29
      %s33 = sphi 0, %s30
      %s34 = sphi 0, %s31
      %s35 = sphi 0, %s32
      %s36 = sphi 0, %s33
      %s37 = sphi 0, %s34
      %s55 = sphi 0, %s57
      %s58 = sphi 0, %s55
      %s59 = sphi 0, %s58
      %s75 = sphi 0, %s59
      %s85 = sphi 0, %s87
      %s88 = sphi 0, %s85
      %s89 = sphi 0, %s88
      %s105 = sphi 0, %s89
      %s113 = sphi 0, %s115
      %s116 = sphi 0, %s113
      %s117 = sphi 0, %s116
      %s133 = sphi 0, %s117
      %s141 = sphi 0, %s143
      %s144 = sphi 0, %s141
      %s145 = sphi 0, %s144
      %s161 = sphi 0, %s145
    $region4: #{tpu_custom_call.1} parent=1 // loop_header_branch
      %25 = sbr.rel (%p23) target = $region8
    $region5: #{tpu_custom_call.1} parent=1 // loop_body
      %s27 = ssub.s32 %s22, 1
      %s28 = ssub.s32 %s22, 2
      %s38 = sadd.s32 1, %s31
      %p39 = scmp.ge.s32.totalorder %s38, 1
      %s40 = scalar_select %p39, 0, %s38
      %s41 = sadd.s32 1, %s30
      %s42 = scalar_select %p39, %s41, %s30
      %p43 = scmp.ge.s32.totalorder %s42, 2
      %s44 = scalar_select %p43, 0, %s42
      %s45 = sadd.s32 1, %s29
      %s46 = scalar_select %p43, %s45, %s29
      %p47 = scmp.ge.s32.totalorder %s46, 2
      %s48 = scalar_select %p47, 0, %s46
      %s49 = ssub.s32 %s29, %s48
      %s50 = ssub.s32 %s30, %s44
      %s51 = sor.u32 %s49, %s50
      %s52 = ssub.s32 %s31, %s40
      %s53 = sor.u32 %s51, %s52
      %p54 = scmp.eq.s32.totalorder %s53, 0
      %s56 = sadd.s32 %s55, 1
      %s57 = scalar_select %p54, %s55, %s56
      %p60 = pneg %p54
      %p61 = scmp.eq.s32.totalorder %s22, 3
      %p62 = por %p60, %p61
      %p63 = scmp.ne.s32.totalorder %s55, %s58
      %p64 = scmp.eq.s32.totalorder %s22, 0
      %p65 = por %p63, %p64
      %p66 = scmp.ne.s32.totalorder %s55, %s58
      %p67 = scmp.eq.s32.totalorder %s27, 3
      %p68 = por %p66, %p67
      %p69 = scmp.ne.s32.totalorder %s58, %s59
      %p70 = scmp.eq.s32.totalorder %s27, 0
      %p71 = por %p69, %p70
      %p72 = scmp.ne.s32.totalorder %s58, %s59
      %p73 = scmp.eq.s32.totalorder %s28, 3
      %p74 = por %p72, %p73
      %p76 = scmp.ne.s32.totalorder %s59, %s75
      %p77 = scmp.eq.s32.totalorder %s28, 0
      %p78 = por %p76, %p77
      %s79 = ssub.s32 %s29, %s48
      %s80 = ssub.s32 %s30, %s44
      %s81 = sor.u32 %s79, %s80
      %s82 = ssub.s32 %s31, %s40
      %s83 = sor.u32 %s81, %s82
      %p84 = scmp.eq.s32.totalorder %s83, 0
      %s86 = sadd.s32 %s85, 1
      %s87 = scalar_select %p84, %s85, %s86
      %p90 = pneg %p84
      %p91 = scmp.eq.s32.totalorder %s22, 3
      %p92 = por %p90, %p91
      %p93 = scmp.ne.s32.totalorder %s85, %s88
      %p94 = scmp.eq.s32.totalorder %s22, 0
      %p95 = por %p93, %p94
      %p96 = scmp.ne.s32.totalorder %s85, %s88
      %p97 = scmp.eq.s32.totalorder %s27, 3
      %p98 = por %p96, %p97
      %p99 = scmp.ne.s32.totalorder %s88, %s89
      %p100 = scmp.eq.s32.totalorder %s27, 0
      %p101 = por %p99, %p100
      %p102 = scmp.ne.s32.totalorder %s88, %s89
      %p103 = scmp.eq.s32.totalorder %s28, 3
      %p104 = por %p102, %p103
      %p106 = scmp.ne.s32.totalorder %s89, %s105
      %p107 = scmp.eq.s32.totalorder %s28, 0
      %p108 = por %p106, %p107
      %s109 = ssub.s32 %s29, %s48
      %s110 = ssub.s32 %s30, %s44
      %s111 = sor.u32 %s109, %s110
      %p112 = scmp.eq.s32.totalorder %s111, 0
      %s114 = sadd.s32 %s113, 1
      %s115 = scalar_select %p112, %s113, %s114
      %p118 = pneg %p112
      %p119 = scmp.eq.s32.totalorder %s22, 3
      %p120 = por %p118, %p119
      %p121 = scmp.ne.s32.totalorder %s113, %s116
      %p122 = scmp.eq.s32.totalorder %s22, 0
      %p123 = por %p121, %p122
      %p124 = scmp.ne.s32.totalorder %s113, %s116
      %p125 = scmp.eq.s32.totalorder %s27, 3
      %p126 = por %p124, %p125
      %p127 = scmp.ne.s32.totalorder %s116, %s117
      %p128 = scmp.eq.s32.totalorder %s27, 0
      %p129 = por %p127, %p128
      %p130 = scmp.ne.s32.totalorder %s116, %s117
      %p131 = scmp.eq.s32.totalorder %s28, 3
      %p132 = por %p130, %p131
      %p134 = scmp.ne.s32.totalorder %s117, %s133
      %p135 = scmp.eq.s32.totalorder %s28, 0
      %p136 = por %p134, %p135
      %s137 = ssub.s32 %s29, %s48
      %s138 = ssub.s32 %s30, %s44
      %s139 = sor.u32 %s137, %s138
      %p140 = scmp.eq.s32.totalorder %s139, 0
      %s142 = sadd.s32 %s141, 1
      %s143 = scalar_select %p140, %s141, %s142
      %p146 = pneg %p140
      %p147 = scmp.eq.s32.totalorder %s22, 3
      %p148 = por %p146, %p147
      %p149 = scmp.ne.s32.totalorder %s141, %s144
      %p150 = scmp.eq.s32.totalorder %s22, 0
      %p151 = por %p149, %p150
      %p152 = scmp.ne.s32.totalorder %s141, %s144
      %p153 = scmp.eq.s32.totalorder %s27, 3
      %p154 = por %p152, %p153
      %p155 = scmp.ne.s32.totalorder %s144, %s145
      %p156 = scmp.eq.s32.totalorder %s27, 0
      %p157 = por %p155, %p156
      %p158 = scmp.ne.s32.totalorder %s144, %s145
      %p159 = scmp.eq.s32.totalorder %s28, 3
      %p160 = por %p158, %p159
      %p162 = scmp.ne.s32.totalorder %s145, %s161
      %p163 = scmp.eq.s32.totalorder %s28, 0
      %p164 = por %p162, %p163
      %p165 = scmp.le.s32.totalorder 1, %s22
      %p166 = scmp.lt.s32.totalorder %s22, 5
      %p167 = pnand %p165, %p166
      %p168 = pneg %p167
      // Predicated region
      $region9: #{tpu_custom_call.1} parent=5 // pred_check
        _
      $region10: #{tpu_custom_call.1} parent=5 // pred_check_branch
        %170 = sbr.rel (%p167) target = $region12
      $region11: #{tpu_custom_call.1} parent=5 // pred_region
        %s171 = ssub.s32 %s22, 1
      $region12: #{tpu_custom_call.1} parent=5 // pred_fallthru
        _
      %p172 = scmp.lt.s32.totalorder %s22, 4
      // Predicated region
      $region13: #{tpu_custom_call.1} parent=5 // pred_check
        %p173 = pneg %p172
      $region14: #{tpu_custom_call.1} parent=5 // pred_check_branch
        %175 = sbr.rel (%p173) target = $region16
      $region15: #{tpu_custom_call.1} parent=5 // pred_region
        // Predicated region
        $region17: #{tpu_custom_call.1} parent=15 // pred_check
          %p176 = pneg %p65
        $region18: #{tpu_custom_call.1} parent=15 // pred_check_branch
          %178 = sbr.rel (%p176) target = $region20
        $region19: #{tpu_custom_call.1} parent=15 // pred_region
          %s179 = sand.u32 %s55, 1
          %s180 = scalar_lea.sflag [#allocation3], %s179
          %s181 = sand.u32 %s55, 1
          %s182 = smul.addr %s181, 4
          %s183 = scalar_lea.vmem [#allocation2], %s182
          %s185 = ssub.s32 64, 64
          %186 = vsyncadd %s180, %s185
          %s187 = sadd.s32 %s31, %s30
          %s188 = smul.addr %s29, 8
          %s189 = sadd.s32 %s187, %s188
          %s190 = smul.addr %s189, 16
          %s191 = scalar_lea.hbm %s0, %s190
          %s192 = sshll.u32 %s183, 4
          %s193 = int_to_ptr.vmem [resolvable:$true] %s192
          %198 = dma.hbm_to_vmem [thread:$0]  %s191, 64, %s193, %s180, 32, 16, 1
        $region20: #{tpu_custom_call.1} parent=15 // pred_fallthru
          _
        // Predicated region
        $region21: #{tpu_custom_call.1} parent=15 // pred_check
          %p199 = pneg %p95
        $region22: #{tpu_custom_call.1} parent=15 // pred_check_branch
          %201 = sbr.rel (%p199) target = $region24
        $region23: #{tpu_custom_call.1} parent=15 // pred_region
          %s202 = sand.u32 %s85, 1
          %s203 = scalar_lea.sflag [#allocation6], %s202
          %s204 = sand.u32 %s85, 1
          %s205 = scalar_lea.vmem [#allocation5], %s204
          %s207 = ssub.s32 16, 16
          %208 = vsyncadd %s203, %s207
          %s209 = sadd.s32 %s31, %s30
          %s210 = smul.addr %s29, 2
          %s211 = sadd.s32 %s209, %s210
          %s212 = smul.addr %s211, 16
          %s213 = scalar_lea.hbm %s1, %s212
          %s215 = sshll.u32 %s205, 4
          %s216 = int_to_ptr.vmem [resolvable:$true] %s215
          %218 = dma.hbm_to_vmem [thread:$0]  %s213, 16, %s216, %s203
        $region24: #{tpu_custom_call.1} parent=15 // pred_fallthru
          _
      $region16: #{tpu_custom_call.1} parent=5 // pred_fallthru
        _
      %p219 = scmp.le.s32.totalorder 1, %s22
      %p220 = scmp.lt.s32.totalorder %s22, 5
      %p221 = pnand %p219, %p220
      %p222 = pneg %p221
      // Predicated region
      $region25: #{tpu_custom_call.1} parent=5 // pred_check
        _
      $region26: #{tpu_custom_call.1} parent=5 // pred_check_branch
        %224 = sbr.rel (%p221) target = $region28
      $region27: #{tpu_custom_call.1} parent=5 // pred_region
        %s225 = ssub.s32 %s22, 1
        %s226 = sand.u32 %s58, 1
        %s227 = scalar_lea.sflag [#allocation3], %s226
        %s228 = sand.u32 %s58, 1
        %s229 = smul.addr %s228, 4
        %s230 = scalar_lea.vmem [#allocation2], %s229
        // Predicated region
        $region29: #{tpu_custom_call.1} parent=27 // pred_check
          %p231 = pneg %p71
        $region30: #{tpu_custom_call.1} parent=27 // pred_check_branch
          %233 = sbr.rel (%p231) target = $region32
        $region31: #{tpu_custom_call.1} parent=27 // pred_region
          %234 = dma.done %s227, 64
        $region32: #{tpu_custom_call.1} parent=27 // pred_fallthru
          _
        %s235 = sand.u32 %s88, 1
        %s236 = scalar_lea.sflag [#allocation6], %s235
        %s237 = sand.u32 %s88, 1
        %s238 = scalar_lea.vmem [#allocation5], %s237
        // Predicated region
        $region33: #{tpu_custom_call.1} parent=27 // pred_check
          %p239 = pneg %p101
        $region34: #{tpu_custom_call.1} parent=27 // pred_check_branch
          %241 = sbr.rel (%p239) target = $region36
        $region35: #{tpu_custom_call.1} parent=27 // pred_region
          %242 = dma.done %s236, 16
        $region36: #{tpu_custom_call.1} parent=27 // pred_fallthru
          _
        %s243 = sand.u32 %s58, 1
        %s244 = scalar_lea.sflag [#allocation3], %s243
        %s245 = sand.u32 %s58, 1
        %s246 = smul.addr %s245, 4
        %s247 = scalar_lea.vmem [#allocation2], %s246
        %p248 = pneg %p71
        %p249 = pneg %p68
        %s250 = sand.u32 %s88, 1
        %s251 = scalar_lea.sflag [#allocation6], %s250
        %s252 = sand.u32 %s88, 1
        %s253 = scalar_lea.vmem [#allocation5], %s252
        %p254 = pneg %p101
        %p255 = pneg %p98
        %p256 = pneg %p129
        %p257 = pneg %p126
        %s258 = sand.u32 %s116, 1
        %s259 = scalar_lea.sflag [#allocation4], %s258
        %s260 = sand.u32 %s116, 1
        %s261 = smul.addr %s260, 4
        %s262 = scalar_lea.vmem [#allocation7], %s261
        %p263 = pneg %p157
        %p264 = pneg %p154
        %s265 = sand.u32 %s144, 1
        %s266 = scalar_lea.sflag [#allocation9], %s265
        %s267 = sand.u32 %s144, 1
        %s268 = smul.addr %s267, 4
        %s269 = scalar_lea.vmem [#allocation8], %s268
        %p270 = scmp.eq.s32.totalorder %s34, 0
        // Predicated region
        $region37: #{tpu_custom_call.1} parent=27 // pred_check
          %p271 = pneg %p270
        $region38: #{tpu_custom_call.1} parent=27 // pred_check_branch
          %273 = sbr.rel (%p271) target = $region40
        $region39: #{tpu_custom_call.1} parent=27 // pred_region
          %274 = vst [vmem:[%s262] sm:$0xf] 0.0
          %275 = vst [vmem:[%s269] sm:$0xf] 0.0
        $region40: #{tpu_custom_call.1} parent=27 // pred_fallthru
          _
        %v276 = vld [vmem:[%s230] sm:$0x1]
        %v277 = vld [vmem:[%s230 + $0x1] sm:$0x1]
        %v278 = vld [vmem:[%s230 + $0x2] sm:$0x1]
        %v279 = vld [vmem:[%s230 + $0x3] sm:$0x1]
        %v280 = vld [vmem:[%s238] sm:$0x1]
        %v281 = vlaneseq
        %vm282 = vcmp.ge.s32.totalorder %v281, 0
        %vm283 = vcmp.lt.s32.totalorder %v281, 128
        %vm284 = vmand %vm282, %vm283
        %v285 = vsel %vm284, %v276, -inf
        %v286 = vsel %vm284, %v277, -inf
        %v287 = vsel %vm284, %v278, -inf
        %v288 = vsel %vm284, %v279, -inf
        %v289 = vmax.f32 %v285, %v286
        %v290 = vmax.f32 %v287, %v288
        %v291 = vmax.f32 %v289, %v290
        %v292 = vsub.f32 %v276, %v291
        %v293 = vsub.f32 %v277, %v291
        %v294 = vsub.f32 %v278, %v291
        %v295 = vsub.f32 %v279, %v291
        %v296 = vmul.f32 %v292, 1.442695
        %v297 = vpow.pop %v296
        %v298 = vmul.f32 %v293, 1.442695
        %v299 = vpow.pop %v298
        %v300 = vmul.f32 %v294, 1.442695
        %v301 = vpow.pop %v300
        %v302 = vmul.f32 %v295, 1.442695
        %v303 = vpow.pop %v302
        %vm304 = vcmask 1040384
        %v305 = vsel %vm304, %v297, 0.0
        %v306 = vsel %vm304, %v299, 0.0
        %v307 = vadd.f32 %v305, %v306
        %v308 = vsel %vm304, %v301, 0.0
        %v309 = vadd.f32 %v307, %v308
        %v310 = vsel %vm304, %v303, 0.0
        %v311 = vadd.f32 %v309, %v310
        %v312 = vlog2.pop %v311
        %v313 = vmul.f32 %v312, 0.6931472
        %v314 = vadd.f32 %v313, %v291
        %vm315 = vcmp.eq.s32.totalorder %v280, 0
        %vm316 = vcmp.eq.s32.totalorder %v280, 1
        %vm317 = vcmp.eq.s32.totalorder %v280, 2
        %vm318 = vcmp.eq.s32.totalorder %v280, 3
        %v319 = vsub.f32 %v314, %v276
        %v320 = vsub.f32 %v314, %v277
        %v321 = vsub.f32 %v314, %v278
        %v322 = vsub.f32 %v314, %v279
        %v323 = vsel %vm315, %v319, 0.0
        %v324 = vsel %vm316, %v320, 0.0
        %v325 = vsel %vm317, %v321, 0.0
        %v326 = vsel %vm318, %v322, 0.0
        %v327 = vld [vmem:[%s262] sm:$0xf]
        %v328 = vadd.f32 %v323, 0.0
        %v329 = vadd.f32 %v324, 0.0
        %v330 = vadd.f32 %v325, 0.0
        %v331 = vadd.f32 %v326, 0.0
        %v336 = vcombine.low %v328, %v329
        %v337 = vcombine.low %v330, %v331
        %v339 = vunpack.c.l.s4 1966171168
        %v340 = vunpack.c.0.s8 %v339
        %v341 = vlaneseq
        %v342 = vshrl.u32 %v341, 7
        %v343 = vsub.s32 %v340, %v342
        %v344 = vrot.slane %v336, %v343
        %v346 = vunpack.c.l.s4 1966171168
        %v347 = vunpack.c.0.s8 %v346
        %v348 = vlaneseq
        %v349 = vshrl.u32 %v348, 7
        %v350 = vsub.s32 %v347, %v349
        %v351 = vrot.slane %v337, %v350
        %v352 = vcombine.low %v344, %v351
        %v354 = vunpack.c.l.s4 1966171168
        %v355 = vunpack.c.0.s8 %v354
        %v356 = vlaneseq
        %v357 = vshrl.u32 %v356, 7
        %v358 = vsub.s32 %v355, %v357
        %v359 = vrot.slane %v352, %v358
        %v361 = vadd.f32 %v327, %v359
        %362 = vst [vmem:[%s262] sm:$0xf] %v361
        %v363 = vld [vmem:[%s269] sm:$0xf]
        %v364 = vsel %vm315, 1, 0
        %v365 = vsel %vm316, 1, 0
        %v366 = vsel %vm317, 1, 0
        %v367 = vsel %vm318, 1, 0
        %v368 = vcvt.s32.f32 %v364
        %v369 = vcvt.s32.f32 %v365
        %v370 = vcvt.s32.f32 %v366
        %v371 = vcvt.s32.f32 %v367
        %v372 = vadd.f32 %v368, 0.0
        %v373 = vadd.f32 %v369, 0.0
        %v374 = vadd.f32 %v370, 0.0
        %v375 = vadd.f32 %v371, 0.0
        %v380 = vcombine.low %v372, %v373
        %v381 = vcombine.low %v374, %v375
        %v383 = vunpack.c.l.s4 1966171168
        %v384 = vunpack.c.0.s8 %v383
        %v385 = vlaneseq
        %v386 = vshrl.u32 %v385, 7
        %v387 = vsub.s32 %v384, %v386
        %v388 = vrot.slane %v380, %v387
        %v390 = vunpack.c.l.s4 1966171168
        %v391 = vunpack.c.0.s8 %v390
        %v392 = vlaneseq
        %v393 = vshrl.u32 %v392, 7
        %v394 = vsub.s32 %v391, %v393
        %v395 = vrot.slane %v381, %v394
        %v396 = vcombine.low %v388, %v395
        %v398 = vunpack.c.l.s4 1966171168
        %v399 = vunpack.c.0.s8 %v398
        %v400 = vlaneseq
        %v401 = vshrl.u32 %v400, 7
        %v402 = vsub.s32 %v399, %v401
        %v403 = vrot.slane %v396, %v402
        %v405 = vadd.f32 %v363, %v403
        %406 = vst [vmem:[%s269] sm:$0xf] %v405
        %s407 = sand.u32 %s116, 1
        %s408 = scalar_lea.sflag [#allocation4], %s407
        %s409 = sand.u32 %s116, 1
        %s410 = smul.addr %s409, 4
        %s411 = scalar_lea.vmem [#allocation7], %s410
        %s412 = sand.u32 %s144, 1
        %s413 = scalar_lea.sflag [#allocation9], %s412
        %s414 = sand.u32 %s144, 1
        %s415 = smul.addr %s414, 4
        %s416 = scalar_lea.vmem [#allocation8], %s415
        // Predicated region
        $region41: #{tpu_custom_call.1} parent=27 // pred_check
          %p417 = pneg %p126
        $region42: #{tpu_custom_call.1} parent=27 // pred_check_branch
          %419 = sbr.rel (%p417) target = $region44
        $region43: #{tpu_custom_call.1} parent=27 // pred_region
          %s421 = ssub.s32 64, 64
          %422 = vsyncadd %s408, %s421
          %s423 = smul.addr %s32, 2
          %s424 = sadd.s32 %s33, %s423
          %s425 = smul.addr %s424, 64
          %s426 = scalar_lea.hbm %s2, %s425
          %s428 = sshll.u32 %s411, 4
          %s429 = int_to_ptr.vmem [resolvable:$true] %s428
          %431 = dma.vmem_to_hbm [thread:$0]  %s429, 64, %s426, %s408
        $region44: #{tpu_custom_call.1} parent=27 // pred_fallthru
          _
        // Predicated region
        $region45: #{tpu_custom_call.1} parent=27 // pred_check
          %p432 = pneg %p154
        $region46: #{tpu_custom_call.1} parent=27 // pred_check_branch
          %434 = sbr.rel (%p432) target = $region48
        $region47: #{tpu_custom_call.1} parent=27 // pred_region
          %s436 = ssub.s32 64, 64
          %437 = vsyncadd %s413, %s436
          %s438 = smul.addr %s32, 2
          %s439 = sadd.s32 %s33, %s438
          %s440 = smul.addr %s439, 64
          %s441 = scalar_lea.hbm %s3, %s440
          %s443 = sshll.u32 %s416, 4
          %s444 = int_to_ptr.vmem [resolvable:$true] %s443
          %446 = dma.vmem_to_hbm [thread:$0]  %s444, 64, %s441, %s413
        $region48: #{tpu_custom_call.1} parent=27 // pred_fallthru
          _
      $region28: #{tpu_custom_call.1} parent=5 // pred_fallthru
        _
      %p447 = scmp.le.s32.totalorder 2, %s22
      // Predicated region
      $region49: #{tpu_custom_call.1} parent=5 // pred_check
        %p448 = pneg %p447
      $region50: #{tpu_custom_call.1} parent=5 // pred_check_branch
        %450 = sbr.rel (%p448) target = $region52
      $region51: #{tpu_custom_call.1} parent=5 // pred_region
        %s451 = ssub.s32 %s22, 2
        // Predicated region
        $region53: #{tpu_custom_call.1} parent=51 // pred_check
          %p452 = pneg %p132
        $region54: #{tpu_custom_call.1} parent=51 // pred_check_branch
          %454 = sbr.rel (%p452) target = $region56
        $region55: #{tpu_custom_call.1} parent=51 // pred_region
          %s455 = sand.u32 %s117, 1
          %s456 = scalar_lea.sflag [#allocation4], %s455
          %s457 = sand.u32 %s117, 1
          %s458 = smul.addr %s457, 4
          %s459 = scalar_lea.vmem [#allocation7], %s458
          %460 = dma.done %s456, 64
        $region56: #{tpu_custom_call.1} parent=51 // pred_fallthru
          _
        // Predicated region
        $region57: #{tpu_custom_call.1} parent=51 // pred_check
          %p461 = pneg %p160
        $region58: #{tpu_custom_call.1} parent=51 // pred_check_branch
          %463 = sbr.rel (%p461) target = $region60
        $region59: #{tpu_custom_call.1} parent=51 // pred_region
          %s464 = sand.u32 %s145, 1
          %s465 = scalar_lea.sflag [#allocation9], %s464
          %s466 = sand.u32 %s145, 1
          %s467 = smul.addr %s466, 4
          %s468 = scalar_lea.vmem [#allocation8], %s467
          %469 = dma.done %s465, 64
        $region60: #{tpu_custom_call.1} parent=51 // pred_fallthru
          _
      $region52: #{tpu_custom_call.1} parent=5 // pred_fallthru
        _
    $region6: #{tpu_custom_call.1} parent=1 // loop_footer
      %s26 = sadd.s32 1, %s22
    $region7: #{tpu_custom_call.1} parent=1 // loop_footer_branch
      %21 = sbr.rel target = $region3
    $region8: #{tpu_custom_call.1} parent=1 // loop_exit
      _
    %470 = vsyncpa [#allocation3], 1
    %s471 = scalar_lea.sflag [#allocation3], 1
    %472 = vsyncpa %s471, 1
    %473 = vsyncpa [#allocation6], 1
    %s474 = scalar_lea.sflag [#allocation6], 1
    %475 = vsyncpa %s474, 1
    %476 = vsyncpa [#allocation4], 1
    %s477 = scalar_lea.sflag [#allocation4], 1
    %478 = vsyncpa %s477, 1
    %479 = vsyncpa [#allocation9], 1
    %s480 = scalar_lea.sflag [#allocation9], 1
    %481 = vsyncpa %s480, 1

</llo_original>
